<compile_context>
chip_gen: v5e
topology: v5e:2x2
jax: 0.10.0
libtpu: 0.0.40
codegen_flags: <defaults>
</compile_context>

<pallas_src>
import jax
import jax.numpy as jnp
from jax.experimental import pallas as pl
from jax.experimental.pallas import tpu as pltpu


# --------------------------------------------------------------------------------------
# Pallas kernel: fused (1x1 conv + BN + ReLU) x2 over all K neighbours at once
# (block-diagonal weights), K-sum, then the (hoisted) third 1x1 conv.
# --------------------------------------------------------------------------------------
def _mlp_sum_kernel(x_ref, w12_ref, b12_ref, w3_ref, b3_ref, o_ref):
    # x_ref  : [1, K*Cp, TN] bf16   neighbour-major packed surface features
    # w12_ref: [2, K*Cp, K*Cp] bf16 block-diagonal folded conv(+BN) matrices
    # b12_ref: [2, K*Cp, 1]   f32   folded biases (tiled K times)
    # w3_ref : [Cp, Cp]       bf16  conv3 weight (channel-padded)
    # b3_ref : [Cp, 1]        f32   conv3 bias   (channel-padded)
    # o_ref  : [1, Cout, TN]  f32
    cp = w3_ref.shape[0]
    kcp = x_ref.shape[1]
    K = kcp // cp
    cout = o_ref.shape[1]

    x = x_ref[0]                                                     # [K*Cp, TN] bf16
    # layer 1 (+ folded BN1) + ReLU — single full-width MXU matmul over all K neighbours
    h = jnp.dot(w12_ref[0], x, preferred_element_type=jnp.float32) + b12_ref[0]
    h = jnp.maximum(h, 0.0).astype(x.dtype)                          # bf16 for next MXU pass
    # layer 2 (+ folded BN2) + ReLU
    h = jnp.dot(w12_ref[1], h, preferred_element_type=jnp.float32) + b12_ref[1]
    h = jnp.maximum(h, 0.0)                                          # [K*Cp, TN] f32
    # sum over the K neighbour slabs (VPU adds).  conv3 is affine, so the K-sum is hoisted
    # above it:  sum_k (W3 @ h_k + b3) == W3 @ (sum_k h_k) + K*b3.
    acc = jnp.sum(h.reshape(K, cp, h.shape[-1]), axis=0)             # [Cp, TN] f32
    y = jnp.dot(w3_ref[...], acc.astype(x.dtype),
                preferred_element_type=jnp.float32) + K * b3_ref[...]
    o_ref[0] = y[:cout]                                              # drop the C padding rows


def mlp_sum_pallas(feat_bkn, W12, b12, W3, b3, out_channels=12, tile_n=4096):
    """feat_bkn: [B, K*Cp, N] bf16  ->  [B, out_channels, N] f32."""
    B, KCp, N = feat_bkn.shape
    Cp = W3.shape[0]
    if N <= tile_n:
        tn = N                                   # full-extent lane block (any N allowed)
    else:
        tn = max(128, (tile_n // 128) * 128)     # lane-aligned tile; ragged last block is
    grid = (B, pl.cdiv(N, tn))                   # masked by Pallas (no pad/slice round trip)

    return pl.pallas_call(
        _mlp_sum_kernel,
        out_shape=jax.ShapeDtypeStruct((B, out_channels, N), jnp.float32),
        grid_spec=pltpu.PrefetchScalarGridSpec(
            num_scalar_prefetch=0,
            grid=grid,
            in_specs=[
                pl.BlockSpec((1, KCp, tn), lambda b, j: (b, 0, j)),
                pl.BlockSpec((2, KCp, KCp), lambda b, j: (0, 0, 0)),
                pl.BlockSpec((2, KCp, 1), lambda b, j: (0, 0, 0)),
                pl.BlockSpec((Cp, Cp), lambda b, j: (0, 0)),
                pl.BlockSpec((Cp, 1), lambda b, j: (0, 0)),
            ],
            out_specs=pl.BlockSpec((1, out_channels, tn), lambda b, j: (b, 0, j)),
        ),
        compiler_params=pltpu.CompilerParams(
            dimension_semantics=("parallel", "parallel"),
            vmem_limit_bytes=32 << 20),
    )(feat_bkn, W12, b12, W3, b3)


# --------------------------------------------------------------------------------------
# JAX glue: kNN grouping + covariance eigen-analysis (get_surface_feat / cov_analyze).
# Emits features directly in the packed kernel layout [B, K*Cp, N], bf16, with a single
# concat + single transpose (no per-channel transposes, no extra HBM passes).
# --------------------------------------------------------------------------------------
def get_surface_feat(points, k, random_inv, key, weighted=False, temperature=1.0,
                     c_pad=16, out_dtype=jnp.bfloat16):
    """points: [B, N, 3] -> packed surface features [B, k*c_pad, N]."""
    B, N, _ = points.shape
    # kNN (self included), squared Euclidean distance.
    # TODO(synk): O(N^2) dense kNN; replace with a tiled top-k for large N.
    d2 = jnp.sum((points[:, :, None, :] - points[:, None, :, :]) ** 2, axis=-1)  # [B,N,N]
    _, idx = jax.lax.top_k(-d2, k)                                               # [B,N,k]
    group_points = jax.vmap(lambda pts, ix: pts[ix])(points, idx)                # [B,N,k,3]

    # ggp_norm[b,n,i,j] = gp[b,n,j] - gp[b,n,i]   -> [B,N,k,k,3]
    X = group_points[:, :, None, :, :] - group_points[:, :, :, None, :]

    if weighted:
        dist_sq = jnp.sum(X ** 2, axis=-1)
        ew = jnp.exp(-dist_sq / temperature ** 2)
        w = jnp.sqrt(ew / jnp.sum(ew, axis=-1, keepdims=True))[..., None]
        X = X * w

    # covariance:  cov[b,n,i] = X[b,n,i].T @ X[b,n,i]   -> [B,N,k,3,3]
    cov = jnp.einsum("bnija,bnijc->bniac", X, X)

    # batched symmetric 3x3 eigendecomposition (ascending, like torch.linalg.eigh)
    L, Q = jnp.linalg.eigh(cov)
    l1, l2, l3 = L[..., 2], L[..., 1], L[..., 0]
    v1, v2, v3 = Q[..., :, 2], Q[..., :, 1], -Q[..., :, 0]

    # NOTE: like the PyTorch reference, no epsilon guard on l1 / norms (degenerate
    # neighbourhoods would NaN in both implementations); eigenvector signs are
    # arbitrary exactly as in torch.linalg.eigh.
    n1 = jnp.linalg.norm(v1, axis=-1)
    n2 = jnp.linalg.norm(v2, axis=-1)
    n3 = jnp.linalg.norm(v3, axis=-1)
    l1, l2, l3 = l1 / n1, l2 / n2, l3 / n3
    v1 = v1 / n1[..., None]
    v2 = v2 / n2[..., None]
    v3 = v3 / n3[..., None]

    a = (l1 - l2) / l1
    p = (l2 - l3) / l1
    s = l3 / l1

    if random_inv:
        if key is None:
            key = jax.random.PRNGKey(0)
        k1, k2 = jax.random.split(key)
        m1 = jax.random.randint(k1, (B, 1, 1, 1), 0, 2).astype(jnp.float32) * 2.0 - 1.0
        m2 = jax.random.randint(k2, (B, 1, 1, 1), 0, 2).astype(jnp.float32) * 2.0 - 1.0
        v1 = v1 * m1
        v2 = v2 * m2
        v3 = jnp.cross(v1, v2)

    # channel order matches torch.cat((a, p, s, v1, v2, v3), dim=-1); pad 12 -> c_pad.
    feat = jnp.concatenate(
        [a[..., None], p[..., None], s[..., None], v1, v2, v3,
         jnp.zeros(a.shape + (c_pad - 12,), a.dtype)],
        axis=-1)                                        # [B, N, k, c_pad]
    feat = feat.astype(out_dtype)                       # bf16 before the transpose pass
    feat = jnp.transpose(feat, (0, 2, 3, 1))            # [B, k, c_pad, N]
    return feat.reshape(B, k * c_pad, N)                # [B, k*c_pad, N]  (kernel layout)


# --------------------------------------------------------------------------------------
# Parameter construction (deterministic, eval-mode BatchNorm folded into conv affines),
# packed as block-diagonal [K*Cp, K*Cp] matrices so the kernel runs 2 big + 1 small matmul.
# --------------------------------------------------------------------------------------
def init_folded_params(key, C=12, K=8, c_pad=16, eps=1e-5, mxu_dtype=jnp.bfloat16):
    ks = jax.random.split(key, 13)
    w1 = 0.1 * jax.random.normal(ks[0], (C, C), jnp.float32)           # Conv2d(C,C,1,bias=False)
    g1 = 1.0 + 0.1 * jax.random.normal(ks[1], (C,), jnp.float32)       # BN1 gamma
    be1 = 0.1 * jax.random.normal(ks[2], (C,), jnp.float32)            # BN1 beta
    rm1 = 0.1 * jax.random.normal(ks[3], (C,), jnp.float32)            # BN1 running_mean
    rv1 = 1.0 + 0.1 * jax.random.uniform(ks[4], (C,), jnp.float32)     # BN1 running_var

    w2 = 0.1 * jax.random.normal(ks[5], (C, C), jnp.float32)           # Conv2d(C,C,1,bias=True)
    b2 = 0.1 * jax.random.normal(ks[6], (C,), jnp.float32)
    g2 = 1.0 + 0.1 * jax.random.normal(ks[7], (C,), jnp.float32)       # BN2
    be2 = 0.1 * jax.random.normal(ks[8], (C,), jnp.float32)
    rm2 = 0.1 * jax.random.normal(ks[9], (C,), jnp.float32)
    rv2 = 1.0 + 0.1 * jax.random.uniform(ks[10], (C,), jnp.float32)

    w3 = 0.1 * jax.random.normal(ks[11], (C, C), jnp.float32)          # Conv2d(C,C,1,bias=True)
    b3 = 0.1 * jax.random.normal(ks[12], (C,), jnp.float32)

    s1 = g1 / jnp.sqrt(rv1 + eps)
    t1 = be1 - rm1 * s1
    s2 = g2 / jnp.sqrt(rv2 + eps)
    t2 = be2 - rm2 * s2

    M1 = s1[:, None] * w1                   # BN1(conv1(x)) == M1 @ x + c1
    c1 = t1
    M2 = s2[:, None] * w2                   # BN2(conv2(h)) == M2 @ h + c2
    c2 = b2 * s2 + t2
    M3 = w3                                 # conv3(h)      == M3 @ h + c3
    c3 = b3

    def pad_mat(M):
        return jnp.zeros((c_pad, c_pad), jnp.float32).at[:C, :C].set(M)

    def pad_vec(v):
        return jnp.zeros((c_pad,), jnp.float32).at[:C].set(v)

    M1p, M2p, M3p = pad_mat(M1), pad_mat(M2), pad_mat(M3)
    c1p, c2p, c3p = pad_vec(c1), pad_vec(c2), pad_vec(c3)

    eyeK = jnp.eye(K, dtype=jnp.float32)
    W1_bd = jnp.kron(eyeK, M1p)                                  # [K*c_pad, K*c_pad]
    W2_bd = jnp.kron(eyeK, M2p)
    b1_bd = jnp.tile(c1p, K)[:, None]                            # [K*c_pad, 1]
    b2_bd = jnp.tile(c2p, K)[:, None]

    W12 = jnp.stack([W1_bd, W2_bd]).astype(mxu_dtype)            # [2, K*c_pad, K*c_pad] bf16
    b12 = jnp.stack([b1_bd, b2_bd]).astype(jnp.float32)          # [2, K*c_pad, 1]       f32
    W3p = M3p.astype(mxu_dtype)                                  # [c_pad, c_pad]        bf16
    b3p = c3p[:, None].astype(jnp.float32)                       # [c_pad, 1]            f32
    return W12, b12, W3p, b3p


# --------------------------------------------------------------------------------------
# Full forward: EnhanceSurfaceConstructor(k, in_channel=12, aggr_type='sum', random_inv=True)
# --------------------------------------------------------------------------------------
def enhance_surface_constructor(center, params, k=8, random_inv=True, inv_key=None,
                                weighted=False, temperature=1.0, tile_n=4096):
    """center: [B, N, 3] -> [B, C, N] with C = 12."""
    W12, b12, W3p, b3p = params
    c_pad = W3p.shape[0]
    feat = get_surface_feat(center, k, random_inv, inv_key, weighted, temperature,
                            c_pad=c_pad)                     # [B, k*c_pad, N] bf16
    # TODO(synk): only the default aggr_type='sum' is implemented ('max'/'avg' would swap the
    # in-kernel K-reduction and drop the conv3 hoist).
    return mlp_sum_pallas(feat, W12, b12, W3p, b3p, out_channels=12, tile_n=tile_n)


if __name__ == "__main__":
    key = jax.random.PRNGKey(0)
    k_pts, k_par, k_inv = jax.random.split(key, 3)

    B, N, k, C = 2, 64, 8, 12
    center = jax.random.normal(k_pts, (B, N, 3), jnp.float32)
    params = init_folded_params(k_par, C=C, K=k)

    out = enhance_surface_constructor(center, params, k=k, random_inv=True, inv_key=k_inv)
    out = jax.block_until_ready(out)
    assert out.shape == (B, C, N), out.shape
    assert bool(jnp.all(jnp.isfinite(out)))
    print("KERNEL_OK")
</pallas_src>

<mosaic_0001>
module attributes {stable_mosaic.version = 11 : i64} {
  func.func @_mlp_sum_kernel(%arg0: i32, %arg1: i32, %arg2: memref<1x128x64xbf16, #tpu.memory_space<vmem>>, %arg3: memref<2x128x128xbf16, #tpu.memory_space<vmem>>, %arg4: memref<2x128x1xf32, #tpu.memory_space<vmem>>, %arg5: memref<16x16xbf16, #tpu.memory_space<vmem>>, %arg6: memref<16x1xf32, #tpu.memory_space<vmem>>, %arg7: memref<1x12x64xf32, #tpu.memory_space<vmem>>) attributes {dimension_semantics = [#tpu.dimension_semantics<parallel>, #tpu.dimension_semantics<parallel>], iteration_bounds = array<i64: 2, 1>, scalar_prefetch = 0 : i64, scratch_operands = 0 : i64, tpu.core_type = #tpu.core_type<tc>, window_params = [{transform_indices = @transform_0, window_bounds = array<i64: 1, 128, 64>}, {pipeline_mode = #tpu.pipeline_mode<synchronous>, transform_indices = @transform_1, window_bounds = array<i64: 2, 128, 128>}, {pipeline_mode = #tpu.pipeline_mode<synchronous>, transform_indices = @transform_2, window_bounds = array<i64: 2, 128, 1>}, {pipeline_mode = #tpu.pipeline_mode<synchronous>, transform_indices = @transform_3, window_bounds = array<i64: 16, 16>}, {pipeline_mode = #tpu.pipeline_mode<synchronous>, transform_indices = @transform_4, window_bounds = array<i64: 16, 1>}, {transform_indices = @transform_5, window_bounds = array<i64: 1, 12, 64>}]} {
    %c0 = arith.constant 0 : index
    %c0_0 = arith.constant 0 : index
    %c0_1 = arith.constant 0 : index
    %0 = vector.load %arg2[%c0, %c0_0, %c0_1] : memref<1x128x64xbf16, #tpu.memory_space<vmem>>, vector<1x128x64xbf16>
    %1 = vector.shape_cast %0 : vector<1x128x64xbf16> to vector<128x64xbf16>
    %c0_2 = arith.constant 0 : index
    %c0_3 = arith.constant 0 : index
    %c0_4 = arith.constant 0 : index
    %2 = vector.load %arg3[%c0_2, %c0_3, %c0_4] : memref<2x128x128xbf16, #tpu.memory_space<vmem>>, vector<1x128x128xbf16>
    %3 = vector.shape_cast %2 : vector<1x128x128xbf16> to vector<128x128xbf16>
    %cst = arith.constant dense<0.000000e+00> : vector<128x64xf32>
    %4 = tpu.matmul %3, %1, %cst {dimension_numbers = #tpu.dot_dimension_numbers<[1], [0], [0], [1], [0, 0, 1, 1], [], []>} : vector<128x128xbf16>, vector<128x64xbf16>, vector<128x64xf32> -> vector<128x64xf32>
    %c0_5 = arith.constant 0 : index
    %c0_6 = arith.constant 0 : index
    %c0_7 = arith.constant 0 : index
    %5 = vector.load %arg4[%c0_5, %c0_6, %c0_7] : memref<2x128x1xf32, #tpu.memory_space<vmem>>, vector<1x128x1xf32>
    %6 = vector.shape_cast %5 : vector<1x128x1xf32> to vector<128x1xf32>
    %7 = vector.broadcast %6 : vector<128x1xf32> to vector<128x64xf32>
    %8 = arith.addf %4, %7 : vector<128x64xf32>
    %cst_8 = arith.constant 0.000000e+00 : f32
    %9 = vector.broadcast %cst_8 : f32 to vector<128x64xf32>
    %10 = arith.maximumf %8, %9 : vector<128x64xf32>
    %11 = arith.truncf %10 : vector<128x64xf32> to vector<128x64xbf16>
    %c1 = arith.constant 1 : index
    %c0_9 = arith.constant 0 : index
    %c0_10 = arith.constant 0 : index
    %12 = vector.load %arg3[%c1, %c0_9, %c0_10] : memref<2x128x128xbf16, #tpu.memory_space<vmem>>, vector<1x128x128xbf16>
    %13 = vector.shape_cast %12 : vector<1x128x128xbf16> to vector<128x128xbf16>
    %cst_11 = arith.constant dense<0.000000e+00> : vector<128x64xf32>
    %14 = tpu.matmul %13, %11, %cst_11 {dimension_numbers = #tpu.dot_dimension_numbers<[1], [0], [0], [1], [0, 0, 1, 1], [], []>} : vector<128x128xbf16>, vector<128x64xbf16>, vector<128x64xf32> -> vector<128x64xf32>
    %c1_12 = arith.constant 1 : index
    %c0_13 = arith.constant 0 : index
    %c0_14 = arith.constant 0 : index
    %15 = vector.load %arg4[%c1_12, %c0_13, %c0_14] : memref<2x128x1xf32, #tpu.memory_space<vmem>>, vector<1x128x1xf32>
    %16 = vector.shape_cast %15 : vector<1x128x1xf32> to vector<128x1xf32>
    %17 = vector.broadcast %16 : vector<128x1xf32> to vector<128x64xf32>
    %18 = arith.addf %14, %17 : vector<128x64xf32>
    %cst_15 = arith.constant 0.000000e+00 : f32
    %19 = vector.broadcast %cst_15 : f32 to vector<128x64xf32>
    %20 = arith.maximumf %18, %19 : vector<128x64xf32>
    %21 = vector.shape_cast %20 : vector<128x64xf32> to vector<8x16x64xf32>
    %cst_16 = arith.constant dense<0.000000e+00> : vector<16x64xf32>
    %22 = vector.multi_reduction <add>, %21, %cst_16 [0] : vector<8x16x64xf32> to vector<16x64xf32>
    %c0_17 = arith.constant 0 : index
    %c0_18 = arith.constant 0 : index
    %23 = vector.load %arg5[%c0_17, %c0_18] : memref<16x16xbf16, #tpu.memory_space<vmem>>, vector<16x16xbf16>
    %24 = arith.truncf %22 : vector<16x64xf32> to vector<16x64xbf16>
    %cst_19 = arith.constant dense<0.000000e+00> : vector<16x64xf32>
    %25 = tpu.matmul %23, %24, %cst_19 {dimension_numbers = #tpu.dot_dimension_numbers<[1], [0], [0], [1], [0, 0, 1, 1], [], []>} : vector<16x16xbf16>, vector<16x64xbf16>, vector<16x64xf32> -> vector<16x64xf32>
    %c0_20 = arith.constant 0 : index
    %c0_21 = arith.constant 0 : index
    %26 = vector.load %arg6[%c0_20, %c0_21] : memref<16x1xf32, #tpu.memory_space<vmem>>, vector<16x1xf32>
    %cst_22 = arith.constant 8.000000e+00 : f32
    %27 = vector.broadcast %cst_22 : f32 to vector<16x1xf32>
    %28 = arith.mulf %27, %26 : vector<16x1xf32>
    %29 = vector.broadcast %28 : vector<16x1xf32> to vector<16x64xf32>
    %30 = arith.addf %25, %29 : vector<16x64xf32>
    %31 = vector.extract_strided_slice %30 {offsets = [0, 0], sizes = [12, 64], strides = [1, 1]} : vector<16x64xf32> to vector<12x64xf32>
    %c0_23 = arith.constant 0 : index
    %c0_24 = arith.constant 0 : index
    %c0_25 = arith.constant 0 : index
    %32 = vector.load %arg7[%c0_23, %c0_24, %c0_25] : memref<1x12x64xf32, #tpu.memory_space<vmem>>, vector<1x12x64xf32>
    %33 = vector.shape_cast %32 : vector<1x12x64xf32> to vector<12x64xf32>
    %34 = vector.shape_cast %31 : vector<12x64xf32> to vector<1x12x64xf32>
    tpu.vector_store %arg7[%c0_23, %c0_24, %c0_25], %34 {strides = array<i32>} : memref<1x12x64xf32, #tpu.memory_space<vmem>>, vector<1x12x64xf32>,
    return
  }
  func.func @transform_0(%arg0: i32, %arg1: i32) -> (i32, i32, i32) {
    %c0_i32 = arith.constant 0 : i32
    %c0_i32_0 = arith.constant 0 : i32
    return %arg0, %c0_i32, %arg1 : i32, i32, i32
  }
  func.func @transform_1(%arg0: i32, %arg1: i32) -> (i32, i32, i32) {
    %c0_i32 = arith.constant 0 : i32
    %c0_i32_0 = arith.constant 0 : i32
    %c0_i32_1 = arith.constant 0 : i32
    %c0_i32_2 = arith.constant 0 : i32
    return %c0_i32, %c0_i32_0, %c0_i32_1 : i32, i32, i32
  }
  func.func @transform_2(%arg0: i32, %arg1: i32) -> (i32, i32, i32) {
    %c0_i32 = arith.constant 0 : i32
    %c0_i32_0 = arith.constant 0 : i32
    %c0_i32_1 = arith.constant 0 : i32
    %c0_i32_2 = arith.constant 0 : i32
    return %c0_i32, %c0_i32_0, %c0_i32_1 : i32, i32, i32
  }
  func.func @transform_3(%arg0: i32, %arg1: i32) -> (i32, i32) {
    %c0_i32 = arith.constant 0 : i32
    %c0_i32_0 = arith.constant 0 : i32
    %c0_i32_1 = arith.constant 0 : i32
    return %c0_i32, %c0_i32_0 : i32, i32
  }
  func.func @transform_4(%arg0: i32, %arg1: i32) -> (i32, i32) {
    %c0_i32 = arith.constant 0 : i32
    %c0_i32_0 = arith.constant 0 : i32
    %c0_i32_1 = arith.constant 0 : i32
    return %c0_i32, %c0_i32_0 : i32, i32
  }
  func.func @transform_5(%arg0: i32, %arg1: i32) -> (i32, i32, i32) {
    %c0_i32 = arith.constant 0 : i32
    %c0_i32_0 = arith.constant 0 : i32
    return %arg0, %c0_i32, %arg1 : i32, i32, i32
  }
}

</mosaic_0001>

<llo_original>
// kernel: tpu_custom_call.1
$region0: #{tpu_custom_call.1}
  #allocation0 [shape = 'u32[]', space=smem, size = 0x4, offset = 0x4, fixed_abs, tag = 'smem constant byte address 0x4 - core index']
  #allocation1 [shape = 'u32[72,128]{1,0:T(1,128)}', space=vmem, size = 0x9000, scoped, tag = 'internal scratch']
  %s0 = inlined_call_operand.vmem [shape: bf16[2,128,64], index: 0, kind: input, shape index: {}]
  %s1 = inlined_call_operand.vmem [shape: bf16[2,128,128], index: 1, kind: input, shape index: {}]
  %s2 = inlined_call_operand.vmem [shape: f32[2,128,1], index: 2, kind: input, shape index: {}]
  %s3 = inlined_call_operand.vmem [shape: bf16[16,16], index: 3, kind: input, shape index: {}]
  %s4 = inlined_call_operand.vmem [shape: f32[16,1], index: 4, kind: input, shape index: {}]
  %s5 = inlined_call_operand.vmem [shape: f32[2,12,64], index: 5, kind: output, shape index: {}]
  %s6 = sld [smem:[#allocation0]]
  $region53: #{tpu_custom_call.1} parent=0
    _
  %s8 = ssub.s32 1, %s6
  %s9 = scalar_select 0, %s8, %s6
  loop: start=0, step=1, limit=4
  $region2: #{tpu_custom_call.1} parent=0 // loop_pre_header
    _
  $region3: #{tpu_custom_call.1} parent=0 // loop_header
    %s11 = sphi 0, %s15
    %p12 = scmp.ge.s32.totalorder %s11, 4
    %s18 = sphi 0, %s30
    %s19 = sphi 0, %s26
    %s20 = sphi 0, %s18
    %s21 = sphi 0, %s19
    %s22 = sphi 0, %s20
    %s23 = sphi 0, %s21
    %s35 = sphi 0, %s37
    %s38 = sphi 0, %s35
    %s39 = sphi 0, %s38
    %s55 = sphi 0, %s39
    %s59 = sphi 0, %s59
    %s61 = sphi 0, %s59
    %s62 = sphi 0, %s61
    %s76 = sphi 0, %s62
    %s80 = sphi 0, %s80
    %s82 = sphi 0, %s80
    %s83 = sphi 0, %s82
    %s97 = sphi 0, %s83
    %s101 = sphi 0, %s101
    %s103 = sphi 0, %s101
    %s104 = sphi 0, %s103
    %s118 = sphi 0, %s104
    %s122 = sphi 0, %s122
    %s124 = sphi 0, %s122
    %s125 = sphi 0, %s124
    %s139 = sphi 0, %s125
    %s147 = sphi 0, %s149
    %s150 = sphi 0, %s147
    %s151 = sphi 0, %s150
    %s167 = sphi 0, %s151
  $region4: #{tpu_custom_call.1} parent=0 // loop_header_branch
    %14 = sbr.rel (%p12) target = $region8
  $region5: #{tpu_custom_call.1} parent=0 // loop_body
    %s16 = ssub.s32 %s11, 1
    %s17 = ssub.s32 %s11, 2
    %s24 = sadd.s32 1, %s19
    %p25 = scmp.ge.s32.totalorder %s24, 1
    %s26 = scalar_select %p25, 0, %s24
    %s27 = sadd.s32 1, %s18
    %s28 = scalar_select %p25, %s27, %s18
    %p29 = scmp.ge.s32.totalorder %s28, 2
    %s30 = scalar_select %p29, 0, %s28
    %s31 = ssub.s32 %s18, %s30
    %s32 = ssub.s32 %s19, %s26
    %s33 = sor.u32 %s31, %s32
    %p34 = scmp.eq.s32.totalorder %s33, 0
    %s36 = sadd.s32 %s35, 1
    %s37 = scalar_select %p34, %s35, %s36
    %p40 = pneg %p34
    %p41 = scmp.eq.s32.totalorder %s11, 1
    %p42 = por %p40, %p41
    %p43 = scmp.ne.s32.totalorder %s35, %s38
    %p44 = scmp.eq.s32.totalorder %s11, 0
    %p45 = por %p43, %p44
    %p46 = scmp.ne.s32.totalorder %s35, %s38
    %p47 = scmp.eq.s32.totalorder %s16, 1
    %p48 = por %p46, %p47
    %p49 = scmp.ne.s32.totalorder %s38, %s39
    %p50 = scmp.eq.s32.totalorder %s16, 0
    %p51 = por %p49, %p50
    %p52 = scmp.ne.s32.totalorder %s38, %s39
    %p53 = scmp.eq.s32.totalorder %s17, 1
    %p54 = por %p52, %p53
    %p56 = scmp.ne.s32.totalorder %s39, %s55
    %p57 = scmp.eq.s32.totalorder %s17, 0
    %p58 = por %p56, %p57
    %s60 = sadd.s32 %s59, 1
    %p63 = scmp.eq.s32.totalorder %s11, 1
    %p64 = scmp.ne.s32.totalorder %s59, %s61
    %p65 = scmp.eq.s32.totalorder %s11, 0
    %p66 = por %p64, %p65
    %p67 = scmp.ne.s32.totalorder %s59, %s61
    %p68 = scmp.eq.s32.totalorder %s16, 1
    %p69 = por %p67, %p68
    %p70 = scmp.ne.s32.totalorder %s61, %s62
    %p71 = scmp.eq.s32.totalorder %s16, 0
    %p72 = por %p70, %p71
    %p73 = scmp.ne.s32.totalorder %s61, %s62
    %p74 = scmp.eq.s32.totalorder %s17, 1
    %p75 = por %p73, %p74
    %p77 = scmp.ne.s32.totalorder %s62, %s76
    %p78 = scmp.eq.s32.totalorder %s17, 0
    %p79 = por %p77, %p78
    %s81 = sadd.s32 %s80, 1
    %p84 = scmp.eq.s32.totalorder %s11, 1
    %p85 = scmp.ne.s32.totalorder %s80, %s82
    %p86 = scmp.eq.s32.totalorder %s11, 0
    %p87 = por %p85, %p86
    %p88 = scmp.ne.s32.totalorder %s80, %s82
    %p89 = scmp.eq.s32.totalorder %s16, 1
    %p90 = por %p88, %p89
    %p91 = scmp.ne.s32.totalorder %s82, %s83
    %p92 = scmp.eq.s32.totalorder %s16, 0
    %p93 = por %p91, %p92
    %p94 = scmp.ne.s32.totalorder %s82, %s83
    %p95 = scmp.eq.s32.totalorder %s17, 1
    %p96 = por %p94, %p95
    %p98 = scmp.ne.s32.totalorder %s83, %s97
    %p99 = scmp.eq.s32.totalorder %s17, 0
    %p100 = por %p98, %p99
    %s102 = sadd.s32 %s101, 1
    %p105 = scmp.eq.s32.totalorder %s11, 1
    %p106 = scmp.ne.s32.totalorder %s101, %s103
    %p107 = scmp.eq.s32.totalorder %s11, 0
    %p108 = por %p106, %p107
    %p109 = scmp.ne.s32.totalorder %s101, %s103
    %p110 = scmp.eq.s32.totalorder %s16, 1
    %p111 = por %p109, %p110
    %p112 = scmp.ne.s32.totalorder %s103, %s104
    %p113 = scmp.eq.s32.totalorder %s16, 0
    %p114 = por %p112, %p113
    %p115 = scmp.ne.s32.totalorder %s103, %s104
    %p116 = scmp.eq.s32.totalorder %s17, 1
    %p117 = por %p115, %p116
    %p119 = scmp.ne.s32.totalorder %s104, %s118
    %p120 = scmp.eq.s32.totalorder %s17, 0
    %p121 = por %p119, %p120
    %s123 = sadd.s32 %s122, 1
    %p126 = scmp.eq.s32.totalorder %s11, 1
    %p127 = scmp.ne.s32.totalorder %s122, %s124
    %p128 = scmp.eq.s32.totalorder %s11, 0
    %p129 = por %p127, %p128
    %p130 = scmp.ne.s32.totalorder %s122, %s124
    %p131 = scmp.eq.s32.totalorder %s16, 1
    %p132 = por %p130, %p131
    %p133 = scmp.ne.s32.totalorder %s124, %s125
    %p134 = scmp.eq.s32.totalorder %s16, 0
    %p135 = por %p133, %p134
    %p136 = scmp.ne.s32.totalorder %s124, %s125
    %p137 = scmp.eq.s32.totalorder %s17, 1
    %p138 = por %p136, %p137
    %p140 = scmp.ne.s32.totalorder %s125, %s139
    %p141 = scmp.eq.s32.totalorder %s17, 0
    %p142 = por %p140, %p141
    %s143 = ssub.s32 %s18, %s30
    %s144 = ssub.s32 %s19, %s26
    %s145 = sor.u32 %s143, %s144
    %p146 = scmp.eq.s32.totalorder %s145, 0
    %s148 = sadd.s32 %s147, 1
    %s149 = scalar_select %p146, %s147, %s148
    %p152 = pneg %p146
    %p153 = scmp.eq.s32.totalorder %s11, 1
    %p154 = por %p152, %p153
    %p155 = scmp.ne.s32.totalorder %s147, %s150
    %p156 = scmp.eq.s32.totalorder %s11, 0
    %p157 = por %p155, %p156
    %p158 = scmp.ne.s32.totalorder %s147, %s150
    %p159 = scmp.eq.s32.totalorder %s16, 1
    %p160 = por %p158, %p159
    %p161 = scmp.ne.s32.totalorder %s150, %s151
    %p162 = scmp.eq.s32.totalorder %s16, 0
    %p163 = por %p161, %p162
    %p164 = scmp.ne.s32.totalorder %s150, %s151
    %p165 = scmp.eq.s32.totalorder %s17, 1
    %p166 = por %p164, %p165
    %p168 = scmp.ne.s32.totalorder %s151, %s167
    %p169 = scmp.eq.s32.totalorder %s17, 0
    %p170 = por %p168, %p169
    %p171 = scmp.le.s32.totalorder 1, %s11
    %p172 = scmp.lt.s32.totalorder %s11, 3
    %p173 = pnand %p171, %p172
    %p174 = pneg %p173
    // Predicated region
    $region9: #{tpu_custom_call.1} parent=5 // pred_check
      _
    $region10: #{tpu_custom_call.1} parent=5 // pred_check_branch
      %176 = sbr.rel (%p173) target = $region12
    $region11: #{tpu_custom_call.1} parent=5 // pred_region
      %s177 = ssub.s32 %s11, 1
      // Predicated region
      $region13: #{tpu_custom_call.1} parent=11 // pred_check
        %p178 = pneg %p72
      $region14: #{tpu_custom_call.1} parent=11 // pred_check_branch
        %180 = sbr.rel (%p178) target = $region16
      $region15: #{tpu_custom_call.1} parent=11 // pred_region
        _
      $region16: #{tpu_custom_call.1} parent=11 // pred_fallthru
        _
      // Predicated region
      $region17: #{tpu_custom_call.1} parent=11 // pred_check
        %p181 = pneg %p93
      $region18: #{tpu_custom_call.1} parent=11 // pred_check_branch
        %183 = sbr.rel (%p181) target = $region20
      $region19: #{tpu_custom_call.1} parent=11 // pred_region
        _
      $region20: #{tpu_custom_call.1} parent=11 // pred_fallthru
        _
      // Predicated region
      $region21: #{tpu_custom_call.1} parent=11 // pred_check
        %p184 = pneg %p114
      $region22: #{tpu_custom_call.1} parent=11 // pred_check_branch
        %186 = sbr.rel (%p184) target = $region24
      $region23: #{tpu_custom_call.1} parent=11 // pred_region
        _
      $region24: #{tpu_custom_call.1} parent=11 // pred_fallthru
        _
      // Predicated region
      $region25: #{tpu_custom_call.1} parent=11 // pred_check
        %p187 = pneg %p135
      $region26: #{tpu_custom_call.1} parent=11 // pred_check_branch
        %189 = sbr.rel (%p187) target = $region28
      $region27: #{tpu_custom_call.1} parent=11 // pred_region
        _
      $region28: #{tpu_custom_call.1} parent=11 // pred_fallthru
        _
    $region12: #{tpu_custom_call.1} parent=5 // pred_fallthru
      _
    %p190 = scmp.lt.s32.totalorder %s11, 2
    // Predicated region
    $region29: #{tpu_custom_call.1} parent=5 // pred_check
      %p191 = pneg %p190
    $region30: #{tpu_custom_call.1} parent=5 // pred_check_branch
      %193 = sbr.rel (%p191) target = $region32
    $region31: #{tpu_custom_call.1} parent=5 // pred_region
      // Predicated region
      $region33: #{tpu_custom_call.1} parent=31 // pred_check
        %p194 = pneg %p45
      $region34: #{tpu_custom_call.1} parent=31 // pred_check_branch
        %196 = sbr.rel (%p194) target = $region36
      $region35: #{tpu_custom_call.1} parent=31 // pred_region
        %p197 = scmp.lt.s32.totalorder %s18, 1
        %s198 = scalar_select %p197, %s18, 1
        %p199 = scmp.lt.s32.totalorder %s19, 0
        %s200 = scalar_select %p199, %s19, 0
        %s201 = smul.addr %s198, 16
        %s202 = sadd.s32 %s200, %s201
        %s203 = smul.addr %s202, 4
        %s204 = scalar_lea.vmem %s0, %s203
      $region36: #{tpu_custom_call.1} parent=31 // pred_fallthru
        _
    $region32: #{tpu_custom_call.1} parent=5 // pred_fallthru
      _
    %p205 = scmp.le.s32.totalorder 1, %s11
    %p206 = scmp.lt.s32.totalorder %s11, 3
    %p207 = pnand %p205, %p206
    %p208 = pneg %p207
    // Predicated region
    $region37: #{tpu_custom_call.1} parent=5 // pred_check
      _
    $region38: #{tpu_custom_call.1} parent=5 // pred_check_branch
      %210 = sbr.rel (%p207) target = $region40
    $region39: #{tpu_custom_call.1} parent=5 // pred_region
      %s211 = ssub.s32 %s11, 1
      %p212 = scmp.lt.s32.totalorder %s20, 1
      %s213 = scalar_select %p212, %s20, 1
      %p214 = scmp.lt.s32.totalorder %s21, 0
      %s215 = scalar_select %p214, %s21, 0
      %s216 = smul.addr %s213, 16
      %s217 = sadd.s32 %s215, %s216
      %s218 = smul.addr %s217, 4
      %s219 = scalar_lea.vmem %s0, %s218
      %p220 = pneg %p51
      %p221 = pneg %p48
      %p222 = pneg %p72
      %p223 = pneg %p69
      %p224 = pneg %p93
      %p225 = pneg %p90
      %p226 = pneg %p114
      %p227 = pneg %p111
      %p228 = pneg %p135
      %p229 = pneg %p132
      %p230 = pneg %p163
      %p231 = pneg %p160
      %p232 = scmp.lt.s32.totalorder %s20, 1
      %s233 = scalar_select %p232, %s20, 1
      %p234 = scmp.lt.s32.totalorder %s21, 0
      %s235 = scalar_select %p234, %s21, 0
      %s236 = smul.addr %s233, 2
      %s237 = sadd.s32 %s235, %s236
      %s238 = smul.addr %s237, 8
      %s239 = scalar_lea.vmem %s5, %s238
      %p240 = scmp.lt.s32.totalorder %s20, 1
      %s241 = scalar_select %p240, %s20, 1
      %p242 = scmp.lt.s32.totalorder %s21, 0
      %s243 = scalar_select %p242, %s21, 0
      %s244 = smul.addr %s241, 16
      %s245 = sadd.s32 %s243, %s244
      %s246 = smul.addr %s245, 4
      %s247 = scalar_lea.vmem %s0, %s246
      %p248 = scmp.lt.s32.totalorder %s20, 1
      %s249 = scalar_select %p248, %s20, 1
      %p250 = scmp.lt.s32.totalorder %s21, 0
      %s251 = scalar_select %p250, %s21, 0
      %s252 = smul.addr %s249, 2
      %s253 = sadd.s32 %s251, %s252
      %s254 = smul.addr %s253, 8
      %s255 = scalar_lea.vmem %s5, %s254
      %v257 = vld [vmem:[%s247] sm:$0xf]
      %v258 = vld [vmem:[%s247 + $0x4] sm:$0xf]
      %v259 = vld [vmem:[%s247 + $0x8] sm:$0xf]
      %v260 = vld [vmem:[%s247 + $0xc] sm:$0xf]
      %v261 = vld [vmem:[%s247 + $0x10] sm:$0xf]
      %v262 = vld [vmem:[%s247 + $0x14] sm:$0xf]
      %v263 = vld [vmem:[%s247 + $0x18] sm:$0xf]
      %v264 = vld [vmem:[%s247 + $0x1c] sm:$0xf]
      %v265 = vld [vmem:[%s247 + $0x20] sm:$0xf]
      %v266 = vld [vmem:[%s247 + $0x24] sm:$0xf]
      %v267 = vld [vmem:[%s247 + $0x28] sm:$0xf]
      %v268 = vld [vmem:[%s247 + $0x2c] sm:$0xf]
      %v269 = vld [vmem:[%s247 + $0x30] sm:$0xf]
      %v270 = vld [vmem:[%s247 + $0x34] sm:$0xf]
      %v271 = vld [vmem:[%s247 + $0x38] sm:$0xf]
      %v272 = vld [vmem:[%s247 + $0x3c] sm:$0xf]
      %v273 = vld [vmem:[%s1] sm:$0xf]
      %v274 = vld [vmem:[%s1 + $0x4] sm:$0xf]
      %v275 = vld [vmem:[%s1 + $0x8] sm:$0xf]
      %v276 = vld [vmem:[%s1 + $0xc] sm:$0xf]
      %v277 = vld [vmem:[%s1 + $0x10] sm:$0xf]
      %v278 = vld [vmem:[%s1 + $0x14] sm:$0xf]
      %v279 = vld [vmem:[%s1 + $0x18] sm:$0xf]
      %v280 = vld [vmem:[%s1 + $0x1c] sm:$0xf]
      %v281 = vld [vmem:[%s1 + $0x20] sm:$0xf]
      %v282 = vld [vmem:[%s1 + $0x24] sm:$0xf]
      %v283 = vld [vmem:[%s1 + $0x28] sm:$0xf]
      %v284 = vld [vmem:[%s1 + $0x2c] sm:$0xf]
      %v285 = vld [vmem:[%s1 + $0x30] sm:$0xf]
      %v286 = vld [vmem:[%s1 + $0x34] sm:$0xf]
      %v287 = vld [vmem:[%s1 + $0x38] sm:$0xf]
      %v288 = vld [vmem:[%s1 + $0x3c] sm:$0xf]
      %v289 = vld [vmem:[%s2] sm:$0xff]
      %v290 = vld [vmem:[%s2 + $0x8] sm:$0xff]
      %v291 = vld [vmem:[%s2 + $0x10] sm:$0xff]
      %v292 = vld [vmem:[%s2 + $0x18] sm:$0xff]
      %v293 = vld [vmem:[%s2 + $0x20] sm:$0xff]
      %v294 = vld [vmem:[%s2 + $0x28] sm:$0xff]
      %v295 = vld [vmem:[%s2 + $0x30] sm:$0xff]
      %v296 = vld [vmem:[%s2 + $0x38] sm:$0xff]
      %v297 = vld [vmem:[%s2 + $0x40] sm:$0xff]
      %v298 = vld [vmem:[%s2 + $0x48] sm:$0xff]
      %v299 = vld [vmem:[%s2 + $0x50] sm:$0xff]
      %v300 = vld [vmem:[%s2 + $0x58] sm:$0xff]
      %v301 = vld [vmem:[%s2 + $0x60] sm:$0xff]
      %v302 = vld [vmem:[%s2 + $0x68] sm:$0xff]
      %v303 = vld [vmem:[%s2 + $0x70] sm:$0xff]
      %v304 = vld [vmem:[%s2 + $0x78] sm:$0xff]
      %306 = vset.pattern.permute.xlu0 0
      %307 = vperm.xlu0 %306, %v289
      %v308 = vpop.permute.xlu0 %307
      %311 = vset.pattern.permute.xlu0 0
      %312 = vperm.xlu0 %311, %v290
      %v313 = vpop.permute.xlu0 %312
      %316 = vset.pattern.permute.xlu0 0
      %317 = vperm.xlu0 %316, %v291
      %v318 = vpop.permute.xlu0 %317
      %321 = vset.pattern.permute.xlu0 0
      %322 = vperm.xlu0 %321, %v292
      %v323 = vpop.permute.xlu0 %322
      %326 = vset.pattern.permute.xlu0 0
      %327 = vperm.xlu0 %326, %v293
      %v328 = vpop.permute.xlu0 %327
      %331 = vset.pattern.permute.xlu0 0
      %332 = vperm.xlu0 %331, %v294
      %v333 = vpop.permute.xlu0 %332
      %336 = vset.pattern.permute.xlu0 0
      %337 = vperm.xlu0 %336, %v295
      %v338 = vpop.permute.xlu0 %337
      %341 = vset.pattern.permute.xlu0 0
      %342 = vperm.xlu0 %341, %v296
      %v343 = vpop.permute.xlu0 %342
      %346 = vset.pattern.permute.xlu0 0
      %347 = vperm.xlu0 %346, %v297
      %v348 = vpop.permute.xlu0 %347
      %351 = vset.pattern.permute.xlu0 0
      %352 = vperm.xlu0 %351, %v298
      %v353 = vpop.permute.xlu0 %352
      %356 = vset.pattern.permute.xlu0 0
      %357 = vperm.xlu0 %356, %v299
      %v358 = vpop.permute.xlu0 %357
      %361 = vset.pattern.permute.xlu0 0
      %362 = vperm.xlu0 %361, %v300
      %v363 = vpop.permute.xlu0 %362
      %366 = vset.pattern.permute.xlu0 0
      %367 = vperm.xlu0 %366, %v301
      %v368 = vpop.permute.xlu0 %367
      %371 = vset.pattern.permute.xlu0 0
      %372 = vperm.xlu0 %371, %v302
      %v373 = vpop.permute.xlu0 %372
      %376 = vset.pattern.permute.xlu0 0
      %377 = vperm.xlu0 %376, %v303
      %v378 = vpop.permute.xlu0 %377
      %381 = vset.pattern.permute.xlu0 0
      %382 = vperm.xlu0 %381, %v304
      %v383 = vpop.permute.xlu0 %382
      %v401 = vunpack.c.l.b16 %v273
      %v402 = vunpack.c.l.b16 %v274
      %v403 = vunpack.c.l.b16 %v275
      %v404 = vunpack.c.l.b16 %v276
      %v405 = vunpack.c.l.b16 %v277
      %v406 = vunpack.c.l.b16 %v278
      %v407 = vunpack.c.l.b16 %v279
      %v408 = vunpack.c.l.b16 %v280
      %v409 = vunpack.c.l.b16 %v281
      %v410 = vunpack.c.l.b16 %v282
      %v411 = vunpack.c.l.b16 %v283
      %v412 = vunpack.c.l.b16 %v284
      %v413 = vunpack.c.l.b16 %v285
      %v414 = vunpack.c.l.b16 %v286
      %v415 = vunpack.c.l.b16 %v287
      %v416 = vunpack.c.l.b16 %v288
      %v417 = vpack.c.b16 %v402, %v401
      %v418 = vpack.c.b16 %v404, %v403
      %v419 = vpack.c.b16 %v406, %v405
      %v420 = vpack.c.b16 %v408, %v407
      %v421 = vpack.c.b16 %v410, %v409
      %v422 = vpack.c.b16 %v412, %v411
      %v423 = vpack.c.b16 %v414, %v413
      %v424 = vpack.c.b16 %v416, %v415
      %v449 = vunpack.c.l.b16 %v257
      %v450 = vunpack.c.l.b16 %v258
      %v451 = vunpack.c.l.b16 %v259
      %v452 = vunpack.c.l.b16 %v260
      %v453 = vunpack.c.l.b16 %v261
      %v454 = vunpack.c.l.b16 %v262
      %v455 = vunpack.c.l.b16 %v263
      %v456 = vunpack.c.l.b16 %v264
      %v457 = vunpack.c.l.b16 %v265
      %v458 = vunpack.c.l.b16 %v266
      %v459 = vunpack.c.l.b16 %v267
      %v460 = vunpack.c.l.b16 %v268
      %v461 = vunpack.c.l.b16 %v269
      %v462 = vunpack.c.l.b16 %v270
      %v463 = vunpack.c.l.b16 %v271
      %v464 = vunpack.c.l.b16 %v272
      %v465 = vpack.c.b16 %v450, %v449
      %v466 = vpack.c.b16 %v452, %v451
      %v467 = vpack.c.b16 %v454, %v453
      %v468 = vpack.c.b16 %v456, %v455
      %v469 = vpack.c.b16 %v458, %v457
      %v470 = vpack.c.b16 %v460, %v459
      %v471 = vpack.c.b16 %v462, %v461
      %v472 = vpack.c.b16 %v464, %v463
      %481 = vmatpush.bf16.msra.mxu0 %v472
      %482 = vmatpush.bf16.msra.mxu0 %v471
      %483 = vmatpush.bf16.msra.mxu0 %v470
      %484 = vmatpush.bf16.msra.mxu0 %v469
      %485 = vmatpush.bf16.msra.mxu0 %v468
      %486 = vmatpush.bf16.msra.mxu0 %v467
      %487 = vmatpush.bf16.msra.mxu0 %v466
      %488 = vmatpush.bf16.msra.mxu0 %v465
      %489 = vmatmul.bf16.gmra.mxu0 %v417
      %v490 = vpop.f32.mrf.mxu0
      %v491 = vadd.f32 %v308, %v490
      %v492 = vpop.f32.mrf.mxu0
      %v493 = vadd.f32 %v313, %v492
      %494 = vmatmul.bf16.gmra.mxu0 %v418
      %v495 = vpop.f32.mrf.mxu0
      %v496 = vadd.f32 %v318, %v495
      %v497 = vpop.f32.mrf.mxu0
      %v498 = vadd.f32 %v323, %v497
      %499 = vmatmul.bf16.gmra.mxu0 %v419
      %v500 = vpop.f32.mrf.mxu0
      %v501 = vadd.f32 %v328, %v500
      %v502 = vpop.f32.mrf.mxu0
      %v503 = vadd.f32 %v333, %v502
      %504 = vmatmul.bf16.gmra.mxu0 %v420
      %v505 = vpop.f32.mrf.mxu0
      %v506 = vadd.f32 %v338, %v505
      %v507 = vpop.f32.mrf.mxu0
      %v508 = vadd.f32 %v343, %v507
      %509 = vmatmul.bf16.gmra.mxu0 %v421
      %v510 = vpop.f32.mrf.mxu0
      %v511 = vadd.f32 %v348, %v510
      %v512 = vpop.f32.mrf.mxu0
      %v513 = vadd.f32 %v353, %v512
      %514 = vmatmul.bf16.gmra.mxu0 %v422
      %v515 = vpop.f32.mrf.mxu0
      %v516 = vadd.f32 %v358, %v515
      %v517 = vpop.f32.mrf.mxu0
      %v518 = vadd.f32 %v363, %v517
      %519 = vmatmul.bf16.gmra.mxu0 %v423
      %v520 = vpop.f32.mrf.mxu0
      %v521 = vadd.f32 %v368, %v520
      %v522 = vpop.f32.mrf.mxu0
      %v523 = vadd.f32 %v373, %v522
      %524 = vmatmul.bf16.gmra.mxu0 %v424
      %v525 = vpop.f32.mrf.mxu0
      %v526 = vadd.f32 %v378, %v525
      %v527 = vpop.f32.mrf.mxu0
      %v528 = vadd.f32 %v383, %v527
      %529 = vdwg.mxu0
      %v530 = vmax.f32 %v491, 0.0
      %v531 = vmax.f32 %v493, 0.0
      %v532 = vmax.f32 %v496, 0.0
      %v533 = vmax.f32 %v498, 0.0
      %v534 = vmax.f32 %v501, 0.0
      %v535 = vmax.f32 %v503, 0.0
      %v536 = vmax.f32 %v506, 0.0
      %v537 = vmax.f32 %v508, 0.0
      %v538 = vmax.f32 %v511, 0.0
      %v539 = vmax.f32 %v513, 0.0
      %v540 = vmax.f32 %v516, 0.0
      %v541 = vmax.f32 %v518, 0.0
      %v542 = vmax.f32 %v521, 0.0
      %v543 = vmax.f32 %v523, 0.0
      %v544 = vmax.f32 %v526, 0.0
      %v545 = vmax.f32 %v528, 0.0
      %v546 = vpack.c.bf16 %v531, %v530
      %v547 = vpack.c.bf16 %v533, %v532
      %v548 = vpack.c.bf16 %v535, %v534
      %v549 = vpack.c.bf16 %v537, %v536
      %v550 = vpack.c.bf16 %v539, %v538
      %v551 = vpack.c.bf16 %v541, %v540
      %v552 = vpack.c.bf16 %v543, %v542
      %v553 = vpack.c.bf16 %v545, %v544
      %s554 = scalar_lea.vmem %s1, 64
      %v555 = vld [vmem:[%s554] sm:$0xf]
      %v556 = vld [vmem:[%s554 + $0x4] sm:$0xf]
      %v557 = vld [vmem:[%s554 + $0x8] sm:$0xf]
      %v558 = vld [vmem:[%s554 + $0xc] sm:$0xf]
      %v559 = vld [vmem:[%s554 + $0x10] sm:$0xf]
      %v560 = vld [vmem:[%s554 + $0x14] sm:$0xf]
      %v561 = vld [vmem:[%s554 + $0x18] sm:$0xf]
      %v562 = vld [vmem:[%s554 + $0x1c] sm:$0xf]
      %v563 = vld [vmem:[%s554 + $0x20] sm:$0xf]
      %v564 = vld [vmem:[%s554 + $0x24] sm:$0xf]
      %v565 = vld [vmem:[%s554 + $0x28] sm:$0xf]
      %v566 = vld [vmem:[%s554 + $0x2c] sm:$0xf]
      %v567 = vld [vmem:[%s554 + $0x30] sm:$0xf]
      %v568 = vld [vmem:[%s554 + $0x34] sm:$0xf]
      %v569 = vld [vmem:[%s554 + $0x38] sm:$0xf]
      %v570 = vld [vmem:[%s554 + $0x3c] sm:$0xf]
      %s571 = scalar_lea.vmem %s2, 128
      %v572 = vld [vmem:[%s571] sm:$0xff]
      %v573 = vld [vmem:[%s571 + $0x8] sm:$0xff]
      %v574 = vld [vmem:[%s571 + $0x10] sm:$0xff]
      %v575 = vld [vmem:[%s571 + $0x18] sm:$0xff]
      %v576 = vld [vmem:[%s571 + $0x20] sm:$0xff]
      %v577 = vld [vmem:[%s571 + $0x28] sm:$0xff]
      %v578 = vld [vmem:[%s571 + $0x30] sm:$0xff]
      %v579 = vld [vmem:[%s571 + $0x38] sm:$0xff]
      %v580 = vld [vmem:[%s571 + $0x40] sm:$0xff]
      %v581 = vld [vmem:[%s571 + $0x48] sm:$0xff]
      %v582 = vld [vmem:[%s571 + $0x50] sm:$0xff]
      %v583 = vld [vmem:[%s571 + $0x58] sm:$0xff]
      %v584 = vld [vmem:[%s571 + $0x60] sm:$0xff]
      %v585 = vld [vmem:[%s571 + $0x68] sm:$0xff]
      %v586 = vld [vmem:[%s571 + $0x70] sm:$0xff]
      %v587 = vld [vmem:[%s571 + $0x78] sm:$0xff]
      %589 = vset.pattern.permute.xlu0 0
      %590 = vperm.xlu0 %589, %v572
      %v591 = vpop.permute.xlu0 %590
      %594 = vset.pattern.permute.xlu0 0
      %595 = vperm.xlu0 %594, %v573
      %v596 = vpop.permute.xlu0 %595
      %599 = vset.pattern.permute.xlu0 0
      %600 = vperm.xlu0 %599, %v574
      %v601 = vpop.permute.xlu0 %600
      %604 = vset.pattern.permute.xlu0 0
      %605 = vperm.xlu0 %604, %v575
      %v606 = vpop.permute.xlu0 %605
      %609 = vset.pattern.permute.xlu0 0
      %610 = vperm.xlu0 %609, %v576
      %v611 = vpop.permute.xlu0 %610
      %614 = vset.pattern.permute.xlu0 0
      %615 = vperm.xlu0 %614, %v577
      %v616 = vpop.permute.xlu0 %615
      %619 = vset.pattern.permute.xlu0 0
      %620 = vperm.xlu0 %619, %v578
      %v621 = vpop.permute.xlu0 %620
      %624 = vset.pattern.permute.xlu0 0
      %625 = vperm.xlu0 %624, %v579
      %v626 = vpop.permute.xlu0 %625
      %629 = vset.pattern.permute.xlu0 0
      %630 = vperm.xlu0 %629, %v580
      %v631 = vpop.permute.xlu0 %630
      %634 = vset.pattern.permute.xlu0 0
      %635 = vperm.xlu0 %634, %v581
      %v636 = vpop.permute.xlu0 %635
      %639 = vset.pattern.permute.xlu0 0
      %640 = vperm.xlu0 %639, %v582
      %v641 = vpop.permute.xlu0 %640
      %644 = vset.pattern.permute.xlu0 0
      %645 = vperm.xlu0 %644, %v583
      %v646 = vpop.permute.xlu0 %645
      %649 = vset.pattern.permute.xlu0 0
      %650 = vperm.xlu0 %649, %v584
      %v651 = vpop.permute.xlu0 %650
      %654 = vset.pattern.permute.xlu0 0
      %655 = vperm.xlu0 %654, %v585
      %v656 = vpop.permute.xlu0 %655
      %659 = vset.pattern.permute.xlu0 0
      %660 = vperm.xlu0 %659, %v586
      %v661 = vpop.permute.xlu0 %660
      %664 = vset.pattern.permute.xlu0 0
      %665 = vperm.xlu0 %664, %v587
      %v666 = vpop.permute.xlu0 %665
      %v684 = vunpack.c.l.b16 %v555
      %v685 = vunpack.c.l.b16 %v556
      %v686 = vunpack.c.l.b16 %v557
      %v687 = vunpack.c.l.b16 %v558
      %v688 = vunpack.c.l.b16 %v559
      %v689 = vunpack.c.l.b16 %v560
      %v690 = vunpack.c.l.b16 %v561
      %v691 = vunpack.c.l.b16 %v562
      %v692 = vunpack.c.l.b16 %v563
      %v693 = vunpack.c.l.b16 %v564
      %v694 = vunpack.c.l.b16 %v565
      %v695 = vunpack.c.l.b16 %v566
      %v696 = vunpack.c.l.b16 %v567
      %v697 = vunpack.c.l.b16 %v568
      %v698 = vunpack.c.l.b16 %v569
      %v699 = vunpack.c.l.b16 %v570
      %v700 = vpack.c.b16 %v685, %v684
      %v701 = vpack.c.b16 %v687, %v686
      %v702 = vpack.c.b16 %v689, %v688
      %v703 = vpack.c.b16 %v691, %v690
      %v704 = vpack.c.b16 %v693, %v692
      %v705 = vpack.c.b16 %v695, %v694
      %v706 = vpack.c.b16 %v697, %v696
      %v707 = vpack.c.b16 %v699, %v698
      %716 = vmatpush.bf16.msra.mxu0 %v553
      %717 = vmatpush.bf16.msra.mxu0 %v552
      %718 = vmatpush.bf16.msra.mxu0 %v551
      %719 = vmatpush.bf16.msra.mxu0 %v550
      %720 = vmatpush.bf16.msra.mxu0 %v549
      %721 = vmatpush.bf16.msra.mxu0 %v548
      %722 = vmatpush.bf16.msra.mxu0 %v547
      %723 = vmatpush.bf16.msra.mxu0 %v546
      %724 = vmatmul.bf16.gmra.mxu0 %v700
      %v725 = vpop.f32.mrf.mxu0
      %v726 = vadd.f32 %v591, %v725
      %v727 = vpop.f32.mrf.mxu0
      %v728 = vadd.f32 %v596, %v727
      %729 = vmatmul.bf16.gmra.mxu0 %v701
      %v730 = vpop.f32.mrf.mxu0
      %v731 = vadd.f32 %v601, %v730
      %v732 = vpop.f32.mrf.mxu0
      %v733 = vadd.f32 %v606, %v732
      %734 = vmatmul.bf16.gmra.mxu0 %v702
      %v735 = vpop.f32.mrf.mxu0
      %v736 = vadd.f32 %v611, %v735
      %v737 = vpop.f32.mrf.mxu0
      %v738 = vadd.f32 %v616, %v737
      %739 = vmatmul.bf16.gmra.mxu0 %v703
      %v740 = vpop.f32.mrf.mxu0
      %v741 = vadd.f32 %v621, %v740
      %v742 = vpop.f32.mrf.mxu0
      %v743 = vadd.f32 %v626, %v742
      %744 = vmatmul.bf16.gmra.mxu0 %v704
      %v745 = vpop.f32.mrf.mxu0
      %v746 = vadd.f32 %v631, %v745
      %v747 = vpop.f32.mrf.mxu0
      %v748 = vadd.f32 %v636, %v747
      %749 = vmatmul.bf16.gmra.mxu0 %v705
      %v750 = vpop.f32.mrf.mxu0
      %v751 = vadd.f32 %v641, %v750
      %v752 = vpop.f32.mrf.mxu0
      %v753 = vadd.f32 %v646, %v752
      %754 = vmatmul.bf16.gmra.mxu0 %v706
      %v755 = vpop.f32.mrf.mxu0
      %v756 = vadd.f32 %v651, %v755
      %v757 = vpop.f32.mrf.mxu0
      %v758 = vadd.f32 %v656, %v757
      %759 = vmatmul.bf16.gmra.mxu0 %v707
      %v760 = vpop.f32.mrf.mxu0
      %v761 = vadd.f32 %v661, %v760
      %v762 = vpop.f32.mrf.mxu0
      %v763 = vadd.f32 %v666, %v762
      %764 = vdwg.mxu0
      %v765 = vmax.f32 %v726, 0.0
      %v766 = vmax.f32 %v728, 0.0
      %v767 = vmax.f32 %v731, 0.0
      %v768 = vmax.f32 %v733, 0.0
      %v769 = vmax.f32 %v736, 0.0
      %v770 = vmax.f32 %v738, 0.0
      %v771 = vmax.f32 %v741, 0.0
      %v772 = vmax.f32 %v743, 0.0
      %v773 = vmax.f32 %v746, 0.0
      %v774 = vmax.f32 %v748, 0.0
      %v775 = vmax.f32 %v751, 0.0
      %v776 = vmax.f32 %v753, 0.0
      %v777 = vmax.f32 %v756, 0.0
      %v778 = vmax.f32 %v758, 0.0
      %v779 = vmax.f32 %v761, 0.0
      %v780 = vmax.f32 %v763, 0.0
      %vm781 = vcmask 523264
      %v782 = vsel %vm781, %v765, 0.0
      %v783 = vsel %vm781, %v767, 0.0
      %v784 = vadd.f32 %v782, %v783
      %v785 = vsel %vm781, %v769, 0.0
      %v786 = vadd.f32 %v784, %v785
      %v787 = vsel %vm781, %v771, 0.0
      %v788 = vadd.f32 %v786, %v787
      %v789 = vsel %vm781, %v773, 0.0
      %v790 = vadd.f32 %v788, %v789
      %v791 = vsel %vm781, %v775, 0.0
      %v792 = vadd.f32 %v790, %v791
      %v793 = vsel %vm781, %v777, 0.0
      %v794 = vadd.f32 %v792, %v793
      %v795 = vsel %vm781, %v779, 0.0
      %v796 = vadd.f32 %v794, %v795
      %v797 = vsel %vm781, %v766, 0.0
      %v798 = vsel %vm781, %v768, 0.0
      %v799 = vadd.f32 %v797, %v798
      %v800 = vsel %vm781, %v770, 0.0
      %v801 = vadd.f32 %v799, %v800
      %v802 = vsel %vm781, %v772, 0.0
      %v803 = vadd.f32 %v801, %v802
      %v804 = vsel %vm781, %v774, 0.0
      %v805 = vadd.f32 %v803, %v804
      %v806 = vsel %vm781, %v776, 0.0
      %v807 = vadd.f32 %v805, %v806
      %v808 = vsel %vm781, %v778, 0.0
      %v809 = vadd.f32 %v807, %v808
      %v810 = vsel %vm781, %v780, 0.0
      %v811 = vadd.f32 %v809, %v810
      %v812 = vld [vmem:[%s3] sm:$0xf]
      %v813 = vld [vmem:[%s3 + $0x4] sm:$0xf]
      %v814 = vpack.c.bf16 %v811, %v796
      %v815 = vld [vmem:[%s4] sm:$0xff]
      %v816 = vld [vmem:[%s4 + $0x8] sm:$0xff]
      %v817 = vmul.f32 %v815, 8.0
      %v818 = vmul.f32 %v816, 8.0
      %820 = vset.pattern.permute.xlu0 0
      %821 = vperm.xlu0 %820, %v817
      %v822 = vpop.permute.xlu0 %821
      %825 = vset.pattern.permute.xlu0 0
      %826 = vperm.xlu0 %825, %v818
      %v827 = vpop.permute.xlu0 %826
      %v831 = vunpack.c.l.b16 %v812
      %v832 = vunpack.c.l.b16 %v813
      %v833 = vpack.c.b16 %v832, %v831
      %vm834 = vcmask 130048
      %v836 = vsel %vm834, %v833, 0
      %838 = vmatpush.bf16.msra.mxu0 0
      %839 = vmatpush.bf16.msra.mxu0 0
      %840 = vmatpush.bf16.msra.mxu0 0
      %841 = vmatpush.bf16.msra.mxu0 0
      %842 = vmatpush.bf16.msra.mxu0 0
      %843 = vmatpush.bf16.msra.mxu0 0
      %844 = vmatpush.bf16.msra.mxu0 0
      %845 = vmatpush.bf16.msra.mxu0 %v814
      %846 = vmatmul.bf16.gmra.mxu0 %v836
      %v847 = vpop.f32.mrf.mxu0
      %v848 = vadd.f32 %v822, %v847
      %v849 = vpop.f32.mrf.mxu0
      %v850 = vadd.f32 %v827, %v849
      %851 = vdwg.mxu0
      %852 = vst.msk [vmem:[%s255] sm:$0xff] %vm781, %v848
      %vm853 = vcmask 519168
      %854 = vst.msk [vmem:[%s255 + $0x8] sm:$0xf] %vm853, %v850
      %p855 = scmp.lt.s32.totalorder %s20, 1
      %s856 = scalar_select %p855, %s20, 1
      %p857 = scmp.lt.s32.totalorder %s21, 0
      %s858 = scalar_select %p857, %s21, 0
      %s859 = smul.addr %s856, 2
      %s860 = sadd.s32 %s858, %s859
      %s861 = smul.addr %s860, 8
      %s862 = scalar_lea.vmem %s5, %s861
      // Predicated region
      $region41: #{tpu_custom_call.1} parent=39 // pred_check
        %p863 = pneg %p160
      $region42: #{tpu_custom_call.1} parent=39 // pred_check_branch
        %865 = sbr.rel (%p863) target = $region44
      $region43: #{tpu_custom_call.1} parent=39 // pred_region
        _
      $region44: #{tpu_custom_call.1} parent=39 // pred_fallthru
        _
    $region40: #{tpu_custom_call.1} parent=5 // pred_fallthru
      _
    %p866 = scmp.le.s32.totalorder 2, %s11
    // Predicated region
    $region45: #{tpu_custom_call.1} parent=5 // pred_check
      %p867 = pneg %p866
    $region46: #{tpu_custom_call.1} parent=5 // pred_check_branch
      %869 = sbr.rel (%p867) target = $region48
    $region47: #{tpu_custom_call.1} parent=5 // pred_region
      %s870 = ssub.s32 %s11, 2
      // Predicated region
      $region49: #{tpu_custom_call.1} parent=47 // pred_check
        %p871 = pneg %p166
      $region50: #{tpu_custom_call.1} parent=47 // pred_check_branch
        %873 = sbr.rel (%p871) target = $region52
      $region51: #{tpu_custom_call.1} parent=47 // pred_region
        %p874 = scmp.lt.s32.totalorder %s22, 1
        %s875 = scalar_select %p874, %s22, 1
        %p876 = scmp.lt.s32.totalorder %s23, 0
        %s877 = scalar_select %p876, %s23, 0
        %s878 = smul.addr %s875, 2
        %s879 = sadd.s32 %s877, %s878
        %s880 = smul.addr %s879, 8
        %s881 = scalar_lea.vmem %s5, %s880
      $region52: #{tpu_custom_call.1} parent=47 // pred_fallthru
        _
    $region48: #{tpu_custom_call.1} parent=5 // pred_fallthru
      _
  $region6: #{tpu_custom_call.1} parent=0 // loop_footer
    %s15 = sadd.s32 1, %s11
  $region7: #{tpu_custom_call.1} parent=0 // loop_footer_branch
    %10 = sbr.rel target = $region3
  $region8: #{tpu_custom_call.1} parent=0 // loop_exit
    _

</llo_original>
